<compile_context>
chip_gen: v7x
topology: tpu7x:2x2x1
jax: 0.10.0
libtpu: 0.0.40
codegen_flags: <defaults>
</compile_context>

<pallas_src>
import functools

import jax
import jax.numpy as jnp
from jax.experimental import pallas as pl
from jax.experimental.pallas import tpu as pltpu

LANES = 128
SUBLANES = 8
TAIL_ROW_ALIGN = 32        # satisfies f32 (8,128), bf16 (16,128), int8 (32,128)
NEUTRAL_PRED = -1e4        # finite (NOT -inf): keeps max(x,0) - x*0 NaN-free
NUM_PARTIALS = 2           # leading "parallel" axis (v7x megacore); 1 if odd


def _round_up(x, m):
    return ((x + m - 1) // m) * m


def _tuning():
    """Generation-dependent row-block / VMEM-limit choice."""
    try:
        vmem_cap = int(pltpu.get_tpu_info().vmem_capacity_bytes)
    except Exception:
        vmem_cap = 64 * 1024 * 1024
    if vmem_cap >= 128 * 1024 * 1024:          # v5e / v6e: 128 MiB VMEM per TC
        return 4096, 64 * 1024 * 1024
    return 4096, 40 * 1024 * 1024              # v7x: 64 MiB VMEM per TC


def _focal_loss_kernel(pred_ref, true_ref, out_ref, *, gamma, alpha, row_block):
    @pl.when(pl.program_id(1) == 0)
    def _():
        out_ref[...] = jnp.zeros_like(out_ref)

    pred = pred_ref[...].astype(jnp.float32)
    true = true_ref[...].astype(jnp.float32)

    # Shared exp(-|x|) feeds both the stable BCE term and the sigmoid.
    e = jnp.exp(-jnp.abs(pred))                                   # EUP
    # BCEWithLogitsLoss(reduction='none'): max(x,0) - x*y + log(1+exp(-|x|))
    bce = jnp.maximum(pred, 0.0) - pred * true + jnp.log1p(e)

    # sigmoid(x) = 1/(1+e) for x>=0 ; e/(1+e) for x<0
    d = 1.0 + e
    r = pl.reciprocal(d, approx=True)                             # EUP slot
    r = r * (2.0 - d * r)                                         # Newton step -> f32 accuracy
    pred_prob = jnp.where(pred >= 0.0, r, e * r)

    # Folded modulation terms (constants folded at trace time):
    #   1 - p_t      = p + true*(1 - 2p)
    #   alpha_factor = (1-alpha) + true*(2*alpha - 1)
    omp = pred_prob + true * (1.0 - 2.0 * pred_prob)
    alpha_factor = (1.0 - alpha) + true * (2.0 * alpha - 1.0)

    if gamma == 1.5:
        mod = omp * jnp.sqrt(omp)
    elif gamma == 2.0:
        mod = omp * omp
    elif gamma == 1.0:
        mod = omp
    elif gamma == 0.0:
        mod = None
    else:
        mod = omp ** gamma

    loss = bce * alpha_factor
    if mod is not None:
        loss = loss * mod

    # Fold (row_block, 128) onto the VMEM-resident (8,128) output: layout-
    # preserving reshape + leading-axis sum (plain VPU adds, no per-step XLU
    # reduce).  The single cross-lane reduction happens in the wrapper.
    out_ref[...] += jnp.sum(
        loss.reshape(row_block // SUBLANES, SUBLANES, LANES), axis=0)


def _focal_partial_sums(pred2, true2, *, row_block, num_blocks, partials,
                        gamma, alpha, vmem_limit):
    """Per-partial (8,128) sums of the focal loss over `num_blocks` full
    row-blocks of the (rows, 128) slabs.  Rows past num_blocks*row_block are
    never read (no padding, no masking)."""
    steps = num_blocks // partials
    kernel = functools.partial(_focal_loss_kernel, gamma=gamma, alpha=alpha,
                               row_block=row_block)
    n_proc = num_blocks * row_block * LANES
    cost = pl.CostEstimate(
        flops=22 * n_proc,
        transcendentals=4 * n_proc,
        bytes_accessed=(pred2.dtype.itemsize + true2.dtype.itemsize) * n_proc
        + partials * SUBLANES * LANES * 4)
    return pl.pallas_call(
        kernel,
        out_shape=jax.ShapeDtypeStruct((partials, SUBLANES, LANES), jnp.float32),
        grid_spec=pltpu.PrefetchScalarGridSpec(
            num_scalar_prefetch=0,
            grid=(partials, steps),
            in_specs=[
                pl.BlockSpec((row_block, LANES), lambda p, j: (p * steps + j, 0)),
                pl.BlockSpec((row_block, LANES), lambda p, j: (p * steps + j, 0)),
            ],
            out_specs=pl.BlockSpec((None, SUBLANES, LANES),
                                   lambda p, j: (p, 0, 0)),
        ),
        compiler_params=pltpu.CompilerParams(
            dimension_semantics=("parallel", "arbitrary"),
            vmem_limit_bytes=vmem_limit),
        cost_estimate=cost,
    )(pred2, true2)


def focal_loss(pred, true, gamma=1.5, alpha=0.25):
    """FocalLoss(BCEWithLogitsLoss(reduction='mean'), gamma, alpha)(pred, true)."""
    # TODO(synk): only the canonical reduction='mean' of the wrapped
    # BCEWithLogitsLoss is implemented ('sum'/'none' branches omitted).
    assert pred.shape == true.shape
    n = int(pred.size)
    gamma = float(gamma)
    alpha = float(alpha)
    row_block, vmem_limit = _tuning()

    if n % LANES == 0:
        # Free lane-dense view of the contiguous buffer; no HBM copy.
        rows = n // LANES
        pred2 = pred.reshape(rows, LANES)
        true2 = true.reshape(rows, LANES)
    else:
        # TODO(synk): non-multiple-of-128 sizes still pay one pad pass; a fully
        # copy-free ragged tail would need a manual-DMA (pl.ANY) path.
        rows = -(-n // LANES)
        pad = rows * LANES - n
        # Neutral padding (pred=-1e4, true=0) -> exactly-zero loss, no mask.
        pred2 = jnp.pad(pred.reshape(-1), (0, pad),
                        constant_values=NEUTRAL_PRED).reshape(rows, LANES)
        true2 = jnp.pad(true.reshape(-1), (0, pad),
                        constant_values=0).reshape(rows, LANES)

    partial_sums = []

    # Bulk: exact full blocks, read in place, no padding and no masking.
    num_full_blocks = rows // row_block
    if num_full_blocks > 0:
        partials = NUM_PARTIALS if num_full_blocks % NUM_PARTIALS == 0 else 1
        partial_sums.append(_focal_partial_sums(
            pred2, true2, row_block=row_block, num_blocks=num_full_blocks,
            partials=partials, gamma=gamma, alpha=alpha,
            vmem_limit=vmem_limit))

    # Tail: remaining (< row_block) rows via a tiny neutral-padded slab.
    tail_rows = rows - num_full_blocks * row_block
    if tail_rows > 0:
        start = num_full_blocks * row_block
        tail_rows_pad = _round_up(tail_rows, TAIL_ROW_ALIGN)
        pred_t = pred2[start:start + tail_rows]
        true_t = true2[start:start + tail_rows]
        if tail_rows_pad != tail_rows:
            pred_t = jnp.pad(pred_t, ((0, tail_rows_pad - tail_rows), (0, 0)),
                             constant_values=NEUTRAL_PRED)
            true_t = jnp.pad(true_t, ((0, tail_rows_pad - tail_rows), (0, 0)),
                             constant_values=0)
        partial_sums.append(_focal_partial_sums(
            pred_t, true_t, row_block=tail_rows_pad, num_blocks=1, partials=1,
            gamma=gamma, alpha=alpha, vmem_limit=vmem_limit))

    # Single cross-lane reduction of the small partial slabs + mean divide.
    total = partial_sums[0].sum()
    for p in partial_sums[1:]:
        total = total + p.sum()
    return total / n


def _focal_loss_ref(pred, true, gamma=1.5, alpha=0.25):
    pred = pred.astype(jnp.float32)
    true = true.astype(jnp.float32)
    bce = (jnp.maximum(pred, 0.0) - pred * true
           + jnp.log1p(jnp.exp(-jnp.abs(pred))))
    p = jax.nn.sigmoid(pred)
    p_t = true * p + (1 - true) * (1 - p)
    af = true * alpha + (1 - true) * (1 - alpha)
    mf = (1.0 - p_t) ** gamma
    return jnp.mean(bce * af * mf)


if __name__ == "__main__":
    key = jax.random.PRNGKey(0)
    k1, k2, k3, k4 = jax.random.split(key, 4)

    # 1) Aligned NCHW logits/targets (copy-free reshape, tail-only path).
    B, C, H, W = 2, 4, 16, 16
    pred = jax.random.normal(k1, (B, C, H, W), dtype=jnp.float32)
    true = (jax.random.uniform(k2, (B, C, H, W)) > 0.8).astype(jnp.float32)
    out = jax.block_until_ready(focal_loss(pred, true, gamma=1.5, alpha=0.25))
    ref = _focal_loss_ref(pred, true, gamma=1.5, alpha=0.25)
    assert jnp.allclose(out, ref, rtol=1e-5, atol=1e-6), (out, ref)

    # 2) Unaligned shape exercises the lane-pad + neutral-value path.
    pred_o = jax.random.normal(k3, (2, 3, 13, 11), dtype=jnp.float32)
    true_o = (jax.random.uniform(k4, (2, 3, 13, 11)) > 0.8).astype(jnp.float32)
    out_o = jax.block_until_ready(focal_loss(pred_o, true_o))
    ref_o = _focal_loss_ref(pred_o, true_o)
    assert jnp.allclose(out_o, ref_o, rtol=1e-5, atol=1e-6), (out_o, ref_o)

    # 3) Native bf16 logits pass through untouched (cast to f32 in-kernel).
    pred_b = pred.astype(jnp.bfloat16)
    out_b = jax.block_until_ready(focal_loss(pred_b, true))
    ref_b = _focal_loss_ref(pred_b, true)
    assert jnp.allclose(out_b, ref_b, rtol=1e-5, atol=1e-6), (out_b, ref_b)

    # 4) Bigger slab exercising bulk full blocks (parallel partials) + tail.
    pred_l = jax.random.normal(k3, (2, 4, 1040, 128), dtype=jnp.float32)
    true_l = (jax.random.uniform(k4, (2, 4, 1040, 128)) > 0.9).astype(jnp.float32)
    out_l = jax.block_until_ready(focal_loss(pred_l, true_l))
    ref_l = _focal_loss_ref(pred_l, true_l)
    assert jnp.allclose(out_l, ref_l, rtol=1e-5, atol=1e-6), (out_l, ref_l)

    print("KERNEL_OK")
</pallas_src>

<mosaic_0001>
module attributes {stable_mosaic.version = 11 : i64} {
  func.func @_focal_loss_kernel(%arg0: i32, %arg1: i32, %arg2: memref<32x128xf32, #tpu.memory_space<vmem>>, %arg3: memref<32x128xf32, #tpu.memory_space<vmem>>, %arg4: memref<1x8x128xf32, #tpu.memory_space<vmem>>) attributes {dimension_semantics = [#tpu.dimension_semantics<parallel>, #tpu.dimension_semantics<arbitrary>], iteration_bounds = array<i64: 1, 1>, scalar_prefetch = 0 : i64, scratch_operands = 0 : i64, tpu.core_type = #tpu.core_type<tc>, window_params = [{transform_indices = @transform_0, window_bounds = array<i64: 32, 128>}, {transform_indices = @transform_1, window_bounds = array<i64: 32, 128>}, {transform_indices = @transform_2, window_bounds = array<i64: 1, 8, 128>}]} {
    %c0_i32 = arith.constant 0 : i32
    %0 = arith.cmpi eq, %arg1, %c0_i32 : i32
    %1 = arith.extui %0 : i1 to i32
    %c0_i32_0 = arith.constant 0 : i32
    %2 = arith.cmpi ne, %1, %c0_i32_0 : i32
    scf.if %2 {
      %cst_19 = arith.constant 0.000000e+00 : f32
      %48 = vector.broadcast %cst_19 : f32 to vector<8x128xf32>
      %c0_20 = arith.constant 0 : index
      %c0_21 = arith.constant 0 : index
      %c0_22 = arith.constant 0 : index
      %49 = vector.load %arg4[%c0_20, %c0_21, %c0_22] : memref<1x8x128xf32, #tpu.memory_space<vmem>>, vector<1x8x128xf32>
      %50 = vector.shape_cast %49 : vector<1x8x128xf32> to vector<8x128xf32>
      %51 = vector.shape_cast %48 : vector<8x128xf32> to vector<1x8x128xf32>
      tpu.vector_store %arg4[%c0_20, %c0_21, %c0_22], %51 {strides = array<i32>} : memref<1x8x128xf32, #tpu.memory_space<vmem>>, vector<1x8x128xf32>,
    } else {
    }
    %c0 = arith.constant 0 : index
    %c0_1 = arith.constant 0 : index
    %3 = vector.load %arg2[%c0, %c0_1] : memref<32x128xf32, #tpu.memory_space<vmem>>, vector<32x128xf32>
    %c0_2 = arith.constant 0 : index
    %c0_3 = arith.constant 0 : index
    %4 = vector.load %arg3[%c0_2, %c0_3] : memref<32x128xf32, #tpu.memory_space<vmem>>, vector<32x128xf32>
    %5 = math.absf %3 : vector<32x128xf32>
    %cst = arith.constant 0.000000e+00 : f32
    %6 = vector.broadcast %cst : f32 to vector<32x128xf32>
    %7 = arith.subf %6, %5 : vector<32x128xf32>
    %8 = math.exp %7 : vector<32x128xf32>
    %cst_4 = arith.constant 0.000000e+00 : f32
    %9 = vector.broadcast %cst_4 : f32 to vector<32x128xf32>
    %10 = arith.maximumf %3, %9 : vector<32x128xf32>
    %11 = arith.mulf %3, %4 : vector<32x128xf32>
    %12 = arith.subf %10, %11 : vector<32x128xf32>
    %13 = math.log1p %8 : vector<32x128xf32>
    %14 = arith.addf %12, %13 : vector<32x128xf32>
    %cst_5 = arith.constant 1.000000e+00 : f32
    %15 = vector.broadcast %cst_5 : f32 to vector<32x128xf32>
    %16 = arith.addf %15, %8 : vector<32x128xf32>
    %17 = tpu.reciprocal %16 {approx = true} : vector<32x128xf32> -> vector<32x128xf32>
    %18 = arith.mulf %16, %17 : vector<32x128xf32>
    %cst_6 = arith.constant 2.000000e+00 : f32
    %19 = vector.broadcast %cst_6 : f32 to vector<32x128xf32>
    %20 = arith.subf %19, %18 : vector<32x128xf32>
    %21 = arith.mulf %17, %20 : vector<32x128xf32>
    %cst_7 = arith.constant 0.000000e+00 : f32
    %22 = vector.broadcast %cst_7 : f32 to vector<32x128xf32>
    %23 = arith.cmpf oge, %3, %22 : vector<32x128xf32>
    %24 = arith.mulf %8, %21 : vector<32x128xf32>
    %25 = arith.select %23, %21, %24 : vector<32x128xi1>, vector<32x128xf32>
    %cst_8 = arith.constant 2.000000e+00 : f32
    %26 = vector.broadcast %cst_8 : f32 to vector<32x128xf32>
    %27 = arith.mulf %26, %25 : vector<32x128xf32>
    %cst_9 = arith.constant 1.000000e+00 : f32
    %28 = vector.broadcast %cst_9 : f32 to vector<32x128xf32>
    %29 = arith.subf %28, %27 : vector<32x128xf32>
    %30 = arith.mulf %4, %29 : vector<32x128xf32>
    %31 = arith.addf %25, %30 : vector<32x128xf32>
    %cst_10 = arith.constant -5.000000e-01 : f32
    %32 = vector.broadcast %cst_10 : f32 to vector<32x128xf32>
    %33 = arith.mulf %4, %32 : vector<32x128xf32>
    %cst_11 = arith.constant 7.500000e-01 : f32
    %34 = vector.broadcast %cst_11 : f32 to vector<32x128xf32>
    %35 = arith.addf %34, %33 : vector<32x128xf32>
    %36 = math.sqrt %31 : vector<32x128xf32>
    %37 = arith.mulf %31, %36 : vector<32x128xf32>
    %38 = arith.mulf %14, %35 : vector<32x128xf32>
    %39 = arith.mulf %38, %37 : vector<32x128xf32>
    %c0_12 = arith.constant 0 : index
    %c0_13 = arith.constant 0 : index
    %c0_14 = arith.constant 0 : index
    %40 = vector.load %arg4[%c0_12, %c0_13, %c0_14] : memref<1x8x128xf32, #tpu.memory_space<vmem>>, vector<1x8x128xf32>
    %41 = vector.shape_cast %40 : vector<1x8x128xf32> to vector<8x128xf32>
    %42 = vector.shape_cast %39 : vector<32x128xf32> to vector<4x8x128xf32>
    %cst_15 = arith.constant dense<0.000000e+00> : vector<8x128xf32>
    %43 = vector.multi_reduction <add>, %42, %cst_15 [0] : vector<4x8x128xf32> to vector<8x128xf32>
    %44 = arith.addf %41, %43 : vector<8x128xf32>
    %c0_16 = arith.constant 0 : index
    %c0_17 = arith.constant 0 : index
    %c0_18 = arith.constant 0 : index
    %45 = vector.load %arg4[%c0_16, %c0_17, %c0_18] : memref<1x8x128xf32, #tpu.memory_space<vmem>>, vector<1x8x128xf32>
    %46 = vector.shape_cast %45 : vector<1x8x128xf32> to vector<8x128xf32>
    %47 = vector.shape_cast %44 : vector<8x128xf32> to vector<1x8x128xf32>
    tpu.vector_store %arg4[%c0_16, %c0_17, %c0_18], %47 {strides = array<i32>} : memref<1x8x128xf32, #tpu.memory_space<vmem>>, vector<1x8x128xf32>,
    return
  }
  func.func @transform_0(%arg0: i32, %arg1: i32) -> (i32, i32) {
    %c1_i32 = arith.constant 1 : i32
    %0 = arith.muli %arg0, %c1_i32 : i32
    %1 = arith.addi %0, %arg1 : i32
    %c0_i32 = arith.constant 0 : i32
    %c0_i32_0 = arith.constant 0 : i32
    return %1, %c0_i32 : i32, i32
  }
  func.func @transform_1(%arg0: i32, %arg1: i32) -> (i32, i32) {
    %c1_i32 = arith.constant 1 : i32
    %0 = arith.muli %arg0, %c1_i32 : i32
    %1 = arith.addi %0, %arg1 : i32
    %c0_i32 = arith.constant 0 : i32
    %c0_i32_0 = arith.constant 0 : i32
    return %1, %c0_i32 : i32, i32
  }
  func.func @transform_2(%arg0: i32, %arg1: i32) -> (i32, i32, i32) {
    %c0_i32 = arith.constant 0 : i32
    %c0_i32_0 = arith.constant 0 : i32
    %c0_i32_1 = arith.constant 0 : i32
    return %arg0, %c0_i32, %c0_i32_0 : i32, i32, i32
  }
}

</mosaic_0001>

<llo_original>
// kernel: tpu_custom_call.1
$region0: #{tpu_custom_call.1}
  #allocation0 [shape = 'u32[]', space=smem, size = 0x4, offset = 0x4, fixed_abs, tag = 'smem constant byte address 0x4 - core index']
  #allocation1 [shape = 'u32[144,128]{1,0:T(1,128)}', space=vmem, size = 0x12000, scoped, tag = 'internal scratch']
  %s0 = inlined_call_operand.hbm [shape: f32[32,128], index: 0, kind: input, shape index: {}]
  %s1 = inlined_call_operand.hbm [shape: f32[32,128], index: 1, kind: input, shape index: {}]
  %s2 = inlined_call_operand.hbm [shape: f32[1,8,128], index: 2, kind: output, shape index: {}]
  %s3 = sld [smem:[#allocation0]]
  $region30: #{tpu_custom_call.1} parent=0
    _
  %s5 = ssub.s32 1, %s3
  %s6 = scalar_select 0, %s5, %s3
  $region1: #{tpu_custom_call.1} parent=0
    #allocation2 [shape = 'u8[16384]{0}', space=vmem, size = 0x4000, scoped, tag = 'input window, operand 0, single buffered']
    #allocation3 [shape = 's32[1]{0}', space=sflag, size = 0x4, scoped, tag = 'scoped memory for tpu_custom_call.1']
    #allocation4 [shape = 's32[1]{0}', space=sflag, size = 0x4, scoped, tag = 'scoped memory for tpu_custom_call.1']
    #allocation5 [shape = 'u8[16384]{0}', space=vmem, size = 0x4000, scoped, tag = 'input window, operand 1, single buffered']
    #allocation6 [shape = 's32[1]{0}', space=sflag, size = 0x4, scoped, tag = 'scoped memory for tpu_custom_call.1']
    #allocation7 [shape = 'u8[4096]{0}', space=vmem, size = 0x1000, scoped, tag = 'output window, operand 0, single buffered']
    %7 = vsyncpa [#allocation3], 0
    %8 = vsyncpa [#allocation6], 0
    %9 = vsyncpa [#allocation4], 0
    // Predicated region
    $region2: #{tpu_custom_call.1} parent=1 // pred_check
      _
    $region3: #{tpu_custom_call.1} parent=1 // pred_check_branch
      %11 = sbr.rel (0) target = $region5
    $region4: #{tpu_custom_call.1} parent=1 // pred_region
      %s12 = sadd.s32 0, 0
      %s13 = smul.u32 4, %s12
      %s15 = ssub.s32 512, 512
      %16 = vsyncadd [#allocation3], %s15
      %s17 = smul.addr %s13, 128
      %s18 = scalar_lea.hbm %s0, %s17
      %s19 = sshll.u32 [#allocation2], 4
      %s20 = int_to_ptr.vmem [resolvable:$true] %s19
      %25 = dma.hbm_to_vmem [thread:$0]  %s18, 512, %s20, [#allocation3], 128, 128, 8
    $region5: #{tpu_custom_call.1} parent=1 // pred_fallthru
      _
    // Predicated region
    $region6: #{tpu_custom_call.1} parent=1 // pred_check
      _
    $region7: #{tpu_custom_call.1} parent=1 // pred_check_branch
      %27 = sbr.rel (0) target = $region9
    $region8: #{tpu_custom_call.1} parent=1 // pred_region
      %s28 = sadd.s32 0, 0
      %s29 = smul.u32 4, %s28
      %s31 = ssub.s32 512, 512
      %32 = vsyncadd [#allocation6], %s31
      %s33 = smul.addr %s29, 128
      %s34 = scalar_lea.hbm %s1, %s33
      %s35 = sshll.u32 [#allocation5], 4
      %s36 = int_to_ptr.vmem [resolvable:$true] %s35
      %41 = dma.hbm_to_vmem [thread:$0]  %s34, 512, %s36, [#allocation6], 128, 128, 8
    $region9: #{tpu_custom_call.1} parent=1 // pred_fallthru
      _
    // Predicated region
    $region10: #{tpu_custom_call.1} parent=1 // pred_check
      _
    $region11: #{tpu_custom_call.1} parent=1 // pred_check_branch
      %43 = sbr.rel (0) target = $region13
    $region12: #{tpu_custom_call.1} parent=1 // pred_region
      %44 = dma.done [#allocation3], 512
    $region13: #{tpu_custom_call.1} parent=1 // pred_fallthru
      _
    // Predicated region
    $region14: #{tpu_custom_call.1} parent=1 // pred_check
      _
    $region15: #{tpu_custom_call.1} parent=1 // pred_check_branch
      %46 = sbr.rel (0) target = $region17
    $region16: #{tpu_custom_call.1} parent=1 // pred_region
      %47 = dma.done [#allocation6], 512
    $region17: #{tpu_custom_call.1} parent=1 // pred_fallthru
      _
    %s48 = sadd.s32 0, 0
    %s49 = smul.u32 4, %s48
    %s50 = sadd.s32 0, 0
    %s51 = smul.u32 4, %s50
    %p52 = scmp.eq.s32.totalorder 0, 0
    // Predicated region
    $region18: #{tpu_custom_call.1} parent=1 // pred_check
      %p53 = pneg %p52
    $region19: #{tpu_custom_call.1} parent=1 // pred_check_branch
      %55 = sbr.rel (%p53) target = $region21
    $region20: #{tpu_custom_call.1} parent=1 // pred_region
      %56 = vst [vmem:[#allocation7] sm:$0xff] 0.0
    $region21: #{tpu_custom_call.1} parent=1 // pred_fallthru
      _
    %v57 = vld [vmem:[#allocation2] sm:$0xff]
    %v58 = vld [vmem:[#allocation2 + $0x8] sm:$0xff]
    %v59 = vld [vmem:[#allocation2 + $0x10] sm:$0xff]
    %v60 = vld [vmem:[#allocation2 + $0x18] sm:$0xff]
    %v61 = vld [vmem:[#allocation5] sm:$0xff]
    %v62 = vld [vmem:[#allocation5 + $0x8] sm:$0xff]
    %v63 = vld [vmem:[#allocation5 + $0x10] sm:$0xff]
    %v64 = vld [vmem:[#allocation5 + $0x18] sm:$0xff]
    %v65 = vand.u32 2147483647, %v57
    %v66 = vand.u32 2147483647, %v58
    %v67 = vand.u32 2147483647, %v59
    %v68 = vand.u32 2147483647, %v60
    %v69 = vsub.f32 0.0, %v65
    %v70 = vsub.f32 0.0, %v66
    %v71 = vsub.f32 0.0, %v67
    %v72 = vsub.f32 0.0, %v68
    %v73 = vmul.f32 %v69, 1.442695
    %v74 = vpow.pop %v73
    %v75 = vmul.f32 %v70, 1.442695
    %v76 = vpow.pop %v75
    %v77 = vmul.f32 %v71, 1.442695
    %v78 = vpow.pop %v77
    %v79 = vmul.f32 %v72, 1.442695
    %v80 = vpow.pop %v79
    %v81 = vmax.f32 %v57, 0.0
    %v82 = vmax.f32 %v58, 0.0
    %v83 = vmax.f32 %v59, 0.0
    %v84 = vmax.f32 %v60, 0.0
    %v85 = vmul.f32 %v57, %v61
    %v86 = vmul.f32 %v58, %v62
    %v87 = vmul.f32 %v59, %v63
    %v88 = vmul.f32 %v60, %v64
    %v89 = vsub.f32 %v81, %v85
    %v90 = vsub.f32 %v82, %v86
    %v91 = vsub.f32 %v83, %v87
    %v92 = vsub.f32 %v84, %v88
    %v93 = vadd.f32 %v74, 1.0
    %v94 = vlog2.pop %v93
    %v95 = vmul.f32 %v94, 0.6931472
    %v96 = vmul.f32 -0.5, %v74
    %v97 = vadd.f32 %v96, 1.0
    %v98 = vmul.f32 %v97, %v74
    %v99 = vand.u32 2147483647, %v74
    %vm100 = vcmp.lt.f32.partialorder %v99, 0.0004427343
    %v101 = vsel %vm100, %v98, %v95
    %v102 = vadd.f32 %v76, 1.0
    %v103 = vlog2.pop %v102
    %v104 = vmul.f32 %v103, 0.6931472
    %v105 = vmul.f32 -0.5, %v76
    %v106 = vadd.f32 %v105, 1.0
    %v107 = vmul.f32 %v106, %v76
    %v108 = vand.u32 2147483647, %v76
    %vm109 = vcmp.lt.f32.partialorder %v108, 0.0004427343
    %v110 = vsel %vm109, %v107, %v104
    %v111 = vadd.f32 %v78, 1.0
    %v112 = vlog2.pop %v111
    %v113 = vmul.f32 %v112, 0.6931472
    %v114 = vmul.f32 -0.5, %v78
    %v115 = vadd.f32 %v114, 1.0
    %v116 = vmul.f32 %v115, %v78
    %v117 = vand.u32 2147483647, %v78
    %vm118 = vcmp.lt.f32.partialorder %v117, 0.0004427343
    %v119 = vsel %vm118, %v116, %v113
    %v120 = vadd.f32 %v80, 1.0
    %v121 = vlog2.pop %v120
    %v122 = vmul.f32 %v121, 0.6931472
    %v123 = vmul.f32 -0.5, %v80
    %v124 = vadd.f32 %v123, 1.0
    %v125 = vmul.f32 %v124, %v80
    %v126 = vand.u32 2147483647, %v80
    %vm127 = vcmp.lt.f32.partialorder %v126, 0.0004427343
    %v128 = vsel %vm127, %v125, %v122
    %v129 = vadd.f32 %v89, %v101
    %v130 = vadd.f32 %v90, %v110
    %v131 = vadd.f32 %v91, %v119
    %v132 = vadd.f32 %v92, %v128
    %v133 = vadd.f32 %v74, 1.0
    %v134 = vadd.f32 %v76, 1.0
    %v135 = vadd.f32 %v78, 1.0
    %v136 = vadd.f32 %v80, 1.0
    %v137 = vrcp.pop %v133
    %v138 = vrcp.pop %v134
    %v139 = vrcp.pop %v135
    %v140 = vrcp.pop %v136
    %v141 = vmul.f32 %v133, %v137
    %v142 = vmul.f32 %v134, %v138
    %v143 = vmul.f32 %v135, %v139
    %v144 = vmul.f32 %v136, %v140
    %v145 = vsub.f32 2.0, %v141
    %v146 = vsub.f32 2.0, %v142
    %v147 = vsub.f32 2.0, %v143
    %v148 = vsub.f32 2.0, %v144
    %v149 = vmul.f32 %v137, %v145
    %v150 = vmul.f32 %v138, %v146
    %v151 = vmul.f32 %v139, %v147
    %v152 = vmul.f32 %v140, %v148
    %vm153 = vcmp.ge.f32.partialorder %v57, 0.0
    %vm154 = vcmp.ge.f32.partialorder %v58, 0.0
    %vm155 = vcmp.ge.f32.partialorder %v59, 0.0
    %vm156 = vcmp.ge.f32.partialorder %v60, 0.0
    %v157 = vmul.f32 %v74, %v149
    %v158 = vmul.f32 %v76, %v150
    %v159 = vmul.f32 %v78, %v151
    %v160 = vmul.f32 %v80, %v152
    %v161 = vsel %vm153, %v149, %v157
    %v162 = vsel %vm154, %v150, %v158
    %v163 = vsel %vm155, %v151, %v159
    %v164 = vsel %vm156, %v152, %v160
    %v165 = vmul.f32 %v161, 2.0
    %v166 = vmul.f32 %v162, 2.0
    %v167 = vmul.f32 %v163, 2.0
    %v168 = vmul.f32 %v164, 2.0
    %v169 = vsub.f32 1.0, %v165
    %v170 = vsub.f32 1.0, %v166
    %v171 = vsub.f32 1.0, %v167
    %v172 = vsub.f32 1.0, %v168
    %v173 = vmul.f32 %v61, %v169
    %v174 = vmul.f32 %v62, %v170
    %v175 = vmul.f32 %v63, %v171
    %v176 = vmul.f32 %v64, %v172
    %v177 = vadd.f32 %v161, %v173
    %v178 = vadd.f32 %v162, %v174
    %v179 = vadd.f32 %v163, %v175
    %v180 = vadd.f32 %v164, %v176
    %v181 = vmul.f32 %v61, -0.5
    %v182 = vmul.f32 %v62, -0.5
    %v183 = vmul.f32 %v63, -0.5
    %v184 = vmul.f32 %v64, -0.5
    %v185 = vadd.f32 %v181, 0.75
    %v186 = vadd.f32 %v182, 0.75
    %v187 = vadd.f32 %v183, 0.75
    %v188 = vadd.f32 %v184, 0.75
    %v189 = vrsqrt.pop %v177
    %v190 = vmul.f32 %v177, %v189
    %vm191 = vcmp.eq.f32.partialorder %v177, inf
    %v192 = vsel %vm191, %v177, %v190
    %vm193 = vcmp.eq.f32.partialorder %v177, 0.0
    %v194 = vand.u32 %v177, 2147483648
    %v195 = vsel %vm193, %v194, %v192
    %v196 = vrsqrt.pop %v178
    %v197 = vmul.f32 %v178, %v196
    %vm198 = vcmp.eq.f32.partialorder %v178, inf
    %v199 = vsel %vm198, %v178, %v197
    %vm200 = vcmp.eq.f32.partialorder %v178, 0.0
    %v201 = vand.u32 %v178, 2147483648
    %v202 = vsel %vm200, %v201, %v199
    %v203 = vrsqrt.pop %v179
    %v204 = vmul.f32 %v179, %v203
    %vm205 = vcmp.eq.f32.partialorder %v179, inf
    %v206 = vsel %vm205, %v179, %v204
    %vm207 = vcmp.eq.f32.partialorder %v179, 0.0
    %v208 = vand.u32 %v179, 2147483648
    %v209 = vsel %vm207, %v208, %v206
    %v210 = vrsqrt.pop %v180
    %v211 = vmul.f32 %v180, %v210
    %vm212 = vcmp.eq.f32.partialorder %v180, inf
    %v213 = vsel %vm212, %v180, %v211
    %vm214 = vcmp.eq.f32.partialorder %v180, 0.0
    %v215 = vand.u32 %v180, 2147483648
    %v216 = vsel %vm214, %v215, %v213
    %v217 = vmul.f32 %v177, %v195
    %v218 = vmul.f32 %v178, %v202
    %v219 = vmul.f32 %v179, %v209
    %v220 = vmul.f32 %v180, %v216
    %v221 = vmul.f32 %v129, %v185
    %v222 = vmul.f32 %v130, %v186
    %v223 = vmul.f32 %v131, %v187
    %v224 = vmul.f32 %v132, %v188
    %v225 = vmul.f32 %v221, %v217
    %v226 = vmul.f32 %v222, %v218
    %v227 = vmul.f32 %v223, %v219
    %v228 = vmul.f32 %v224, %v220
    %v229 = vld [vmem:[#allocation7] sm:$0xff]
    %v230 = vadd.f32 %v225, %v226
    %v231 = vadd.f32 %v230, %v227
    %v232 = vadd.f32 %v231, %v228
    %v233 = vadd.f32 %v229, %v232
    %234 = vst [vmem:[#allocation7] sm:$0xff] %v233
    // Predicated region
    $region22: #{tpu_custom_call.1} parent=1 // pred_check
      _
    $region23: #{tpu_custom_call.1} parent=1 // pred_check_branch
      %236 = sbr.rel (0) target = $region25
    $region24: #{tpu_custom_call.1} parent=1 // pred_region
      %s238 = ssub.s32 128, 128
      %239 = vsyncadd [#allocation4], %s238
      %s241 = sshll.u32 [#allocation7], 4
      %s242 = int_to_ptr.vmem [resolvable:$true] %s241
      %244 = dma.vmem_to_hbm [thread:$0]  %s242, 128, %s2, [#allocation4]
    $region25: #{tpu_custom_call.1} parent=1 // pred_fallthru
      _
    // Predicated region
    $region26: #{tpu_custom_call.1} parent=1 // pred_check
      _
    $region27: #{tpu_custom_call.1} parent=1 // pred_check_branch
      %246 = sbr.rel (0) target = $region29
    $region28: #{tpu_custom_call.1} parent=1 // pred_region
      %247 = dma.done [#allocation4], 128
    $region29: #{tpu_custom_call.1} parent=1 // pred_fallthru
      _
    %248 = vsyncpa [#allocation3], 1
    %249 = vsyncpa [#allocation6], 1
    %250 = vsyncpa [#allocation4], 1

</llo_original>
